<compile_context>
chip_gen: v6e
topology: v6e:2x2x1
jax: 0.10.0
libtpu: 0.0.40
codegen_flags: <defaults>
</compile_context>

<pallas_src>
import functools

import jax
import jax.numpy as jnp
from jax.experimental import pallas as pl
from jax.experimental.pallas import tpu as pltpu


def _round_up(x, m):
    return ((x + m - 1) // m) * m


def _vmem_capacity_bytes():
    """Physical VMEM of the local TPU; conservative fallback if unknown."""
    try:
        info = pltpu.get_tpu_info()
        cap = getattr(info, "vmem_capacity_bytes", None)
        if cap:
            return int(cap)
    except Exception:
        pass
    return 64 * 1024 * 1024  # assume v7x-sized VMEM when in doubt


def _patch_merging_kernel(x_ref, we_ref, wo_ref, b_ref, o_ref, *, eps, c4):
    """Fused LayerNorm(4C) + Linear(4C->2C, no bias) on one tile of row-pairs.

    x_ref:  (tp, 2, W2, 2C)   [:,0] = even-h rows, channels [x0|x2]
                              [:,1] = odd-h  rows, channels [x1|x3]
    we_ref: (2C, 2C)          folded+permuted weight, even half
    wo_ref: (2C, 2C)          folded+permuted weight, odd half
    b_ref:  (1, 2C)  f32      folded LayerNorm bias (beta @ W^T)
    o_ref:  (tp*W2, 2C)
    """
    x = x_ref[...]
    xe = x[:, 0].astype(jnp.float32)            # (tp, W2, 2C)
    xo = x[:, 1].astype(jnp.float32)

    # One-pass LN stats over the full 4C channels (split across xe / xo).
    inv_c4 = 1.0 / c4
    s1 = jnp.sum(xe, -1, keepdims=True) + jnp.sum(xo, -1, keepdims=True)
    s2 = (jnp.sum(xe * xe, -1, keepdims=True)
          + jnp.sum(xo * xo, -1, keepdims=True))
    mean = s1 * inv_c4
    var = jnp.maximum(s2 * inv_c4 - mean * mean, 0.0)
    inv = jax.lax.rsqrt(var + eps)
    shift = -mean * inv

    cdt = we_ref.dtype                          # matmul in the weight's dtype
    xe_n = (xe * inv + shift).astype(cdt)
    xo_n = (xo * inv + shift).astype(cdt)

    tp, w2, c2 = xe_n.shape
    rows = tp * w2
    # NOTE: this reshape is a free relayout only when W2 is a multiple of the
    # sublane tile (8 for f32, 16 for bf16); otherwise it costs a VMEM copy.
    acc = jnp.dot(xe_n.reshape(rows, c2), we_ref[...],
                  preferred_element_type=jnp.float32)
    acc = acc + jnp.dot(xo_n.reshape(rows, c2), wo_ref[...],
                        preferred_element_type=jnp.float32)
    acc = acc + b_ref[...]
    o_ref[...] = acc.astype(o_ref.dtype)


def _choose_tp(bh2, w2, c4, c2, x_bytes, w_bytes, o_bytes,
               target_rows, budget_bytes):
    """Pick h-pairs per tile (multiple of 8), VMEM-bounded, grid >= ~4 steps."""
    # Grid-invariant operands are double-buffered by default; count them twice.
    fixed = 2 * (c2 * c2 * w_bytes) * 2 + 2 * (c2 * 4)
    per_row = (c4 * x_bytes * 2          # fused even+odd input block, dbl-buf
               + c2 * o_bytes * 2        # output block, dbl-buf
               + c4 * 4                  # f32 working copies (xe/xo)
               + c4 * w_bytes            # normalized copies in matmul dtype
               + c2 * 4)                 # f32 accumulator
    rows_fit = max(w2, (budget_bytes - fixed) // per_row)
    rows = max(w2, min(target_rows, rows_fit))
    tp = _round_up(max(1, -(-rows // w2)), 8)
    # Keep >= ~4 grid steps when possible (megacore sharding + pipelining).
    tp_cap = _round_up(max(1, -(-bh2 // 4)), 8)
    tp = min(tp, max(8, tp_cap))
    tp = min(tp, _round_up(bh2, 8))
    return max(8, tp)


def fold_params(params):
    """Fold LN affine into the reduction weight/bias ONCE per layer.

    params: 'reduction_weight' (2C, 4C) [PyTorch nn.Linear layout],
            'norm_weight' (4C,), 'norm_bias' (4C,).
    Returns kernel-ready {'w_even','w_odd','bias'}.
    """
    w = params["reduction_weight"]
    w_dtype = w.dtype
    c2, c4 = w.shape
    C = c4 // 4
    wt = w.astype(jnp.float32).T                                  # (4C, 2C)
    gamma = params["norm_weight"].astype(jnp.float32)
    beta = params["norm_bias"].astype(jnp.float32)
    w_fold = gamma[:, None] * wt                                  # (4C, 2C)
    b_fold = beta @ wt                                            # (2C,)
    # Torch concat order is [x0, x1, x2, x3]; kernel order is [x0, x2 | x1, x3].
    perm = jnp.concatenate([jnp.arange(0, C), jnp.arange(2 * C, 3 * C),
                            jnp.arange(C, 2 * C), jnp.arange(3 * C, 4 * C)])
    w_perm = w_fold[perm]
    return {
        "w_even": w_perm[:c2].astype(w_dtype),                    # (2C, 2C)
        "w_odd": w_perm[c2:].astype(w_dtype),                     # (2C, 2C)
        "bias": b_fold.reshape(1, c2),                            # (1, 2C) f32
    }


def patch_merging(x, H, W, folded, *, eps=1e-5):
    """Pallas-backed equivalent of PatchMerging.forward.

    x: (B, L, C) with L == H*W.  folded: output of fold_params().
    Returns (B, ceil(H/2)*ceil(W/2), 2C).
    """
    B, L, C = x.shape
    assert L == H * W
    c2, c4 = 2 * C, 4 * C
    assert folded["w_even"].shape == (c2, c2)

    xs = x.reshape(B, H, W, C)
    if (H % 2 == 1) or (W % 2 == 1):
        xs = jnp.pad(xs, ((0, 0), (0, H % 2), (0, W % 2), (0, 0)))
    Hp, Wp = xs.shape[1], xs.shape[2]
    H2, W2 = Hp // 2, Wp // 2
    bh2 = B * H2
    rows = bh2 * W2

    # Free reshape: (B, Hp, Wp, C) -> (B*Hp/2, 2, Wp/2, 2C).
    # [p, 0, w2, :] == [x0|x2] and [p, 1, w2, :] == [x1|x3].
    xr = xs.reshape(bh2, 2, W2, c2)

    w_e, w_o, bias = folded["w_even"], folded["w_odd"], folded["bias"]

    x_bytes = jnp.dtype(x.dtype).itemsize
    w_bytes = jnp.dtype(w_e.dtype).itemsize
    o_bytes = x_bytes

    # Generation-aware VMEM sizing (v5e/v6e: 128 MiB, v7x: 64 MiB).
    cap = _vmem_capacity_bytes()
    if cap >= 96 * 1024 * 1024:
        budget, target_rows, vmem_limit = 40 << 20, 1024, 64 << 20
    else:
        budget, target_rows, vmem_limit = 22 << 20, 512, 36 << 20

    tp = _choose_tp(bh2, W2, c4, c2, x_bytes, w_bytes, o_bytes,
                    target_rows=target_rows, budget_bytes=budget)
    tile_rows = tp * W2
    grid = (pl.cdiv(bh2, tp),)

    flops = 2 * rows * c4 * c2 + 8 * rows * c4
    bytes_accessed = (rows * c4 * x_bytes + rows * c2 * o_bytes
                      + 2 * c2 * c2 * w_bytes + c2 * 4)

    out = pl.pallas_call(
        functools.partial(_patch_merging_kernel, eps=float(eps), c4=float(c4)),
        out_shape=jax.ShapeDtypeStruct((rows, c2), x.dtype),
        grid_spec=pltpu.PrefetchScalarGridSpec(
            num_scalar_prefetch=0,
            grid=grid,
            in_specs=[
                pl.BlockSpec((tp, 2, W2, c2), lambda i: (i, 0, 0, 0)),  # row pairs
                pl.BlockSpec((c2, c2), lambda i: (0, 0)),               # W_even
                pl.BlockSpec((c2, c2), lambda i: (0, 0)),               # W_odd
                pl.BlockSpec((1, c2), lambda i: (0, 0)),                # folded bias
            ],
            out_specs=pl.BlockSpec((tile_rows, c2), lambda i: (i, 0)),
        ),
        compiler_params=pltpu.CompilerParams(
            dimension_semantics=("parallel",),
            vmem_limit_bytes=vmem_limit,
        ),
        cost_estimate=pl.CostEstimate(flops=int(flops),
                                      transcendentals=int(rows),
                                      bytes_accessed=int(bytes_accessed)),
    )(xr, w_e, w_o, bias)

    return out.reshape(B, H2 * W2, c2)


def init_params(key, dim, dtype=jnp.float32):
    k1, k2, k3 = jax.random.split(key, 3)
    # nn.Linear(4*dim, 2*dim, bias=False): weight shape (2*dim, 4*dim).
    reduction_weight = (jax.random.normal(k1, (2 * dim, 4 * dim), dtype)
                        * (1.0 / jnp.sqrt(4.0 * dim)))
    norm_weight = jnp.ones((4 * dim,), dtype) + 0.01 * jax.random.normal(
        k2, (4 * dim,), dtype)
    norm_bias = 0.01 * jax.random.normal(k3, (4 * dim,), dtype)
    return {"reduction_weight": reduction_weight,
            "norm_weight": norm_weight,
            "norm_bias": norm_bias}


def _reference(x, H, W, params, eps=1e-5):
    """Pure-JAX reference mirroring the PyTorch forward."""
    B, L, C = x.shape
    x = x.reshape(B, H, W, C)
    if (H % 2 == 1) or (W % 2 == 1):
        x = jnp.pad(x, ((0, 0), (0, H % 2), (0, W % 2), (0, 0)))
    x0 = x[:, 0::2, 0::2, :]
    x1 = x[:, 1::2, 0::2, :]
    x2 = x[:, 0::2, 1::2, :]
    x3 = x[:, 1::2, 1::2, :]
    xc = jnp.concatenate([x0, x1, x2, x3], -1).reshape(B, -1, 4 * C)
    mean = jnp.mean(xc, -1, keepdims=True)
    var = jnp.mean((xc - mean) ** 2, -1, keepdims=True)
    xn = (xc - mean) / jnp.sqrt(var + eps)
    xn = xn * params["norm_weight"] + params["norm_bias"]
    return xn @ params["reduction_weight"].T


if __name__ == "__main__":
    key = jax.random.PRNGKey(0)
    kx, kp, kx2, kx3 = jax.random.split(key, 4)

    dim = 32                       # C=32 -> 4C=128 lanes in, 2C=64 lanes out
    params = init_params(kp, dim)
    folded = jax.tree_util.tree_map(jax.block_until_ready, fold_params(params))

    # Main case: B=2, H=W=16 (L=256).
    B, H, W = 2, 16, 16
    x = jax.random.normal(kx, (B, H * W, dim), jnp.float32)
    out = jax.block_until_ready(patch_merging(x, H, W, folded))
    ref = _reference(x, H, W, params)
    assert out.shape == (B, (H // 2) * (W // 2), 2 * dim), out.shape
    assert float(jnp.max(jnp.abs(out - ref))) < 3e-4

    # Odd-H case (exercises the bottom-row zero pad, like F.pad in torch).
    B2, H2_, W2_ = 2, 15, 16
    x2 = jax.random.normal(kx2, (B2, H2_ * W2_, dim), jnp.float32)
    out2 = jax.block_until_ready(patch_merging(x2, H2_, W2_, folded))
    ref2 = _reference(x2, H2_, W2_, params)
    assert out2.shape == (B2, 8 * 8, 2 * dim), out2.shape
    assert float(jnp.max(jnp.abs(out2 - ref2))) < 3e-4

    # Larger batch (exercises the ragged last grid block / masked writeback).
    B3, H3, W3 = 9, 16, 16
    x3 = jax.random.normal(kx3, (B3, H3 * W3, dim), jnp.float32)
    out3 = jax.block_until_ready(patch_merging(x3, H3, W3, folded))
    ref3 = _reference(x3, H3, W3, params)
    assert out3.shape == (B3, 8 * 8, 2 * dim), out3.shape
    assert float(jnp.max(jnp.abs(out3 - ref3))) < 3e-4

    print("KERNEL_OK")
</pallas_src>

<mosaic_0001>
module attributes {stable_mosaic.version = 11 : i64} {
  func.func @_patch_merging_kernel(%arg0: i32, %arg1: memref<8x2x8x64xf32, #tpu.memory_space<vmem>>, %arg2: memref<64x64xf32, #tpu.memory_space<vmem>>, %arg3: memref<64x64xf32, #tpu.memory_space<vmem>>, %arg4: memref<1x64xf32, #tpu.memory_space<vmem>>, %arg5: memref<64x64xf32, #tpu.memory_space<vmem>>) attributes {dimension_semantics = [#tpu.dimension_semantics<parallel>], iteration_bounds = array<i64: 2>, scalar_prefetch = 0 : i64, scratch_operands = 0 : i64, tpu.core_type = #tpu.core_type<tc>, window_params = [{transform_indices = @transform_0, window_bounds = array<i64: 8, 2, 8, 64>}, {pipeline_mode = #tpu.pipeline_mode<synchronous>, transform_indices = @transform_1, window_bounds = array<i64: 64, 64>}, {pipeline_mode = #tpu.pipeline_mode<synchronous>, transform_indices = @transform_2, window_bounds = array<i64: 64, 64>}, {pipeline_mode = #tpu.pipeline_mode<synchronous>, transform_indices = @transform_3, window_bounds = array<i64: 1, 64>}, {transform_indices = @transform_4, window_bounds = array<i64: 64, 64>}]} {
    %c0 = arith.constant 0 : index
    %c0_0 = arith.constant 0 : index
    %c0_1 = arith.constant 0 : index
    %c0_2 = arith.constant 0 : index
    %0 = vector.load %arg1[%c0, %c0_0, %c0_1, %c0_2] : memref<8x2x8x64xf32, #tpu.memory_space<vmem>>, vector<8x2x8x64xf32>
    %1 = vector.extract_strided_slice %0 {offsets = [0, 0, 0, 0], sizes = [8, 1, 8, 64], strides = [1, 1, 1, 1]} : vector<8x2x8x64xf32> to vector<8x1x8x64xf32>
    %2 = vector.shape_cast %1 : vector<8x1x8x64xf32> to vector<8x8x64xf32>
    %3 = vector.extract_strided_slice %0 {offsets = [0, 1, 0, 0], sizes = [8, 1, 8, 64], strides = [1, 1, 1, 1]} : vector<8x2x8x64xf32> to vector<8x1x8x64xf32>
    %4 = vector.shape_cast %3 : vector<8x1x8x64xf32> to vector<8x8x64xf32>
    %cst = arith.constant dense<0.000000e+00> : vector<8x8xf32>
    %5 = vector.multi_reduction <add>, %2, %cst [2] : vector<8x8x64xf32> to vector<8x8xf32>
    %6 = vector.shape_cast %5 : vector<8x8xf32> to vector<8x8x1xf32>
    %cst_3 = arith.constant dense<0.000000e+00> : vector<8x8xf32>
    %7 = vector.multi_reduction <add>, %4, %cst_3 [2] : vector<8x8x64xf32> to vector<8x8xf32>
    %8 = vector.shape_cast %7 : vector<8x8xf32> to vector<8x8x1xf32>
    %9 = arith.addf %6, %8 : vector<8x8x1xf32>
    %10 = arith.mulf %2, %2 : vector<8x8x64xf32>
    %cst_4 = arith.constant dense<0.000000e+00> : vector<8x8xf32>
    %11 = vector.multi_reduction <add>, %10, %cst_4 [2] : vector<8x8x64xf32> to vector<8x8xf32>
    %12 = vector.shape_cast %11 : vector<8x8xf32> to vector<8x8x1xf32>
    %13 = arith.mulf %4, %4 : vector<8x8x64xf32>
    %cst_5 = arith.constant dense<0.000000e+00> : vector<8x8xf32>
    %14 = vector.multi_reduction <add>, %13, %cst_5 [2] : vector<8x8x64xf32> to vector<8x8xf32>
    %15 = vector.shape_cast %14 : vector<8x8xf32> to vector<8x8x1xf32>
    %16 = arith.addf %12, %15 : vector<8x8x1xf32>
    %cst_6 = arith.constant 7.812500e-03 : f32
    %17 = vector.broadcast %cst_6 : f32 to vector<8x8x1xf32>
    %18 = arith.mulf %9, %17 : vector<8x8x1xf32>
    %cst_7 = arith.constant 7.812500e-03 : f32
    %19 = vector.broadcast %cst_7 : f32 to vector<8x8x1xf32>
    %20 = arith.mulf %16, %19 : vector<8x8x1xf32>
    %21 = arith.mulf %18, %18 : vector<8x8x1xf32>
    %22 = arith.subf %20, %21 : vector<8x8x1xf32>
    %cst_8 = arith.constant 0.000000e+00 : f32
    %23 = vector.broadcast %cst_8 : f32 to vector<8x8x1xf32>
    %24 = arith.maximumf %22, %23 : vector<8x8x1xf32>
    %cst_9 = arith.constant 9.99999974E-6 : f32
    %25 = vector.broadcast %cst_9 : f32 to vector<8x8x1xf32>
    %26 = arith.addf %24, %25 : vector<8x8x1xf32>
    %27 = math.rsqrt %26 : vector<8x8x1xf32>
    %cst_10 = arith.constant 0.000000e+00 : f32
    %28 = vector.broadcast %cst_10 : f32 to vector<8x8x1xf32>
    %29 = arith.subf %28, %18 : vector<8x8x1xf32>
    %30 = arith.mulf %29, %27 : vector<8x8x1xf32>
    %31 = vector.broadcast %27 : vector<8x8x1xf32> to vector<8x8x64xf32>
    %32 = arith.mulf %2, %31 : vector<8x8x64xf32>
    %33 = vector.broadcast %30 : vector<8x8x1xf32> to vector<8x8x64xf32>
    %34 = arith.addf %32, %33 : vector<8x8x64xf32>
    %35 = vector.broadcast %27 : vector<8x8x1xf32> to vector<8x8x64xf32>
    %36 = arith.mulf %4, %35 : vector<8x8x64xf32>
    %37 = vector.broadcast %30 : vector<8x8x1xf32> to vector<8x8x64xf32>
    %38 = arith.addf %36, %37 : vector<8x8x64xf32>
    %39 = vector.shape_cast %34 : vector<8x8x64xf32> to vector<64x64xf32>
    %c0_11 = arith.constant 0 : index
    %c0_12 = arith.constant 0 : index
    %40 = vector.load %arg2[%c0_11, %c0_12] : memref<64x64xf32, #tpu.memory_space<vmem>>, vector<64x64xf32>
    %cst_13 = arith.constant dense<0.000000e+00> : vector<64x64xf32>
    %41 = tpu.matmul %39, %40, %cst_13 {dimension_numbers = #tpu.dot_dimension_numbers<[1], [0], [0], [1], [0, 0, 1, 1], [], []>} : vector<64x64xf32>, vector<64x64xf32>, vector<64x64xf32> -> vector<64x64xf32>
    %42 = vector.shape_cast %38 : vector<8x8x64xf32> to vector<64x64xf32>
    %c0_14 = arith.constant 0 : index
    %c0_15 = arith.constant 0 : index
    %43 = vector.load %arg3[%c0_14, %c0_15] : memref<64x64xf32, #tpu.memory_space<vmem>>, vector<64x64xf32>
    %cst_16 = arith.constant dense<0.000000e+00> : vector<64x64xf32>
    %44 = tpu.matmul %42, %43, %cst_16 {dimension_numbers = #tpu.dot_dimension_numbers<[1], [0], [0], [1], [0, 0, 1, 1], [], []>} : vector<64x64xf32>, vector<64x64xf32>, vector<64x64xf32> -> vector<64x64xf32>
    %45 = arith.addf %41, %44 : vector<64x64xf32>
    %c0_17 = arith.constant 0 : index
    %c0_18 = arith.constant 0 : index
    %46 = vector.load %arg4[%c0_17, %c0_18] : memref<1x64xf32, #tpu.memory_space<vmem>>, vector<1x64xf32>
    %47 = vector.broadcast %46 : vector<1x64xf32> to vector<64x64xf32>
    %48 = arith.addf %45, %47 : vector<64x64xf32>
    %c0_19 = arith.constant 0 : index
    %c0_20 = arith.constant 0 : index
    %49 = vector.load %arg5[%c0_19, %c0_20] : memref<64x64xf32, #tpu.memory_space<vmem>>, vector<64x64xf32>
    tpu.vector_store %arg5[%c0_19, %c0_20], %48 {strides = array<i32>} : memref<64x64xf32, #tpu.memory_space<vmem>>, vector<64x64xf32>,
    return
  }
  func.func @transform_0(%arg0: i32) -> (i32, i32, i32, i32) {
    %c0_i32 = arith.constant 0 : i32
    %c0_i32_0 = arith.constant 0 : i32
    %c0_i32_1 = arith.constant 0 : i32
    %c0_i32_2 = arith.constant 0 : i32
    return %arg0, %c0_i32, %c0_i32_0, %c0_i32_1 : i32, i32, i32, i32
  }
  func.func @transform_1(%arg0: i32) -> (i32, i32) {
    %c0_i32 = arith.constant 0 : i32
    %c0_i32_0 = arith.constant 0 : i32
    %c0_i32_1 = arith.constant 0 : i32
    return %c0_i32, %c0_i32_0 : i32, i32
  }
  func.func @transform_2(%arg0: i32) -> (i32, i32) {
    %c0_i32 = arith.constant 0 : i32
    %c0_i32_0 = arith.constant 0 : i32
    %c0_i32_1 = arith.constant 0 : i32
    return %c0_i32, %c0_i32_0 : i32, i32
  }
  func.func @transform_3(%arg0: i32) -> (i32, i32) {
    %c0_i32 = arith.constant 0 : i32
    %c0_i32_0 = arith.constant 0 : i32
    %c0_i32_1 = arith.constant 0 : i32
    return %c0_i32, %c0_i32_0 : i32, i32
  }
  func.func @transform_4(%arg0: i32) -> (i32, i32) {
    %c0_i32 = arith.constant 0 : i32
    %c0_i32_0 = arith.constant 0 : i32
    return %arg0, %c0_i32 : i32, i32
  }
}

</mosaic_0001>

<llo_original>
// kernel: tpu_custom_call.1
$region0: #{tpu_custom_call.1}
  #allocation0 [shape = 'u32[]', space=smem, size = 0x4, offset = 0x4, fixed_abs, tag = 'smem constant byte address 0x4 - core index']
  #allocation1 [shape = 'u32[144,128]{1,0:T(1,128)}', space=vmem, size = 0x12000, scoped, tag = 'internal scratch']
  %s0 = inlined_call_operand.hbm [shape: f32[16,2,8,64], index: 0, kind: input, shape index: {}]
  %s1 = inlined_call_operand.hbm [shape: f32[64,64], index: 1, kind: input, shape index: {}]
  %s2 = inlined_call_operand.hbm [shape: f32[64,64], index: 2, kind: input, shape index: {}]
  %s3 = inlined_call_operand.vmem [shape: f32[1,64], index: 3, kind: input, shape index: {}]
  %s4 = inlined_call_operand.vmem [shape: f32[128,64], index: 4, kind: output, shape index: {}]
  %s5 = sld [smem:[#allocation0]]
  $region61: #{tpu_custom_call.1} parent=0
    _
  %s7 = ssub.s32 1, %s5
  %s8 = scalar_select 0, %s7, %s5
  $region1: #{tpu_custom_call.1} parent=0
    #allocation2 [shape = 'u8[131072]{0}', space=vmem, size = 0x20000, scoped, tag = 'input window, operand 0']
    #allocation3 [shape = 's32[2]{0}', space=sflag, size = 0x8, scoped, tag = 'scoped memory for tpu_custom_call.1']
    #allocation4 [shape = 'u8[32768]{0}', space=vmem, size = 0x8000, scoped, tag = 'input window, operand 1, single buffered']
    #allocation5 [shape = 's32[1]{0}', space=sflag, size = 0x4, scoped, tag = 'scoped memory for tpu_custom_call.1']
    #allocation6 [shape = 'u8[32768]{0}', space=vmem, size = 0x8000, scoped, tag = 'input window, operand 2, single buffered']
    %9 = vsyncpa [#allocation3], 0
    %s10 = scalar_lea.sflag [#allocation3], 1
    %11 = vsyncpa %s10, 0
    %12 = vsyncpa [#allocation5], 0
    loop: start=0, step=1, limit=4
    $region2: #{tpu_custom_call.1} parent=1 // loop_pre_header
      _
    $region3: #{tpu_custom_call.1} parent=1 // loop_header
      %s14 = sphi 0, %s18
      %p15 = scmp.ge.s32.totalorder %s14, 4
      %s24 = sphi 0, %s26
      %s27 = sphi 0, %s24
      %s28 = sphi 0, %s27
      %s44 = sphi 0, %s28
      %s48 = sphi 0, %s48
      %s50 = sphi 0, %s48
      %s51 = sphi 0, %s50
      %s65 = sphi 0, %s51
      %s69 = sphi 0, %s69
      %s71 = sphi 0, %s69
      %s72 = sphi 0, %s71
      %s86 = sphi 0, %s72
      %s90 = sphi 0, %s90
      %s92 = sphi 0, %s90
      %s93 = sphi 0, %s92
      %s107 = sphi 0, %s93
      %s113 = sphi 0, %s115
      %s116 = sphi 0, %s113
      %s117 = sphi 0, %s116
      %s133 = sphi 0, %s117
    $region4: #{tpu_custom_call.1} parent=1 // loop_header_branch
      %17 = sbr.rel (%p15) target = $region8
    $region5: #{tpu_custom_call.1} parent=1 // loop_body
      %s19 = ssub.s32 %s14, 1
      %s20 = ssub.s32 %s14, 2
      %s21 = sadd.s32 %s14, 1
      %s22 = ssub.s32 %s14, %s21
      %p23 = scmp.eq.s32.totalorder %s22, 0
      %s25 = sadd.s32 %s24, 1
      %s26 = scalar_select %p23, %s24, %s25
      %p29 = pneg %p23
      %p30 = scmp.eq.s32.totalorder %s14, 1
      %p31 = por %p29, %p30
      %p32 = scmp.ne.s32.totalorder %s24, %s27
      %p33 = scmp.eq.s32.totalorder %s14, 0
      %p34 = por %p32, %p33
      %p35 = scmp.ne.s32.totalorder %s24, %s27
      %p36 = scmp.eq.s32.totalorder %s19, 1
      %p37 = por %p35, %p36
      %p38 = scmp.ne.s32.totalorder %s27, %s28
      %p39 = scmp.eq.s32.totalorder %s19, 0
      %p40 = por %p38, %p39
      %p41 = scmp.ne.s32.totalorder %s27, %s28
      %p42 = scmp.eq.s32.totalorder %s20, 1
      %p43 = por %p41, %p42
      %p45 = scmp.ne.s32.totalorder %s28, %s44
      %p46 = scmp.eq.s32.totalorder %s20, 0
      %p47 = por %p45, %p46
      %s49 = sadd.s32 %s48, 1
      %p52 = scmp.eq.s32.totalorder %s14, 1
      %p53 = scmp.ne.s32.totalorder %s48, %s50
      %p54 = scmp.eq.s32.totalorder %s14, 0
      %p55 = por %p53, %p54
      %p56 = scmp.ne.s32.totalorder %s48, %s50
      %p57 = scmp.eq.s32.totalorder %s19, 1
      %p58 = por %p56, %p57
      %p59 = scmp.ne.s32.totalorder %s50, %s51
      %p60 = scmp.eq.s32.totalorder %s19, 0
      %p61 = por %p59, %p60
      %p62 = scmp.ne.s32.totalorder %s50, %s51
      %p63 = scmp.eq.s32.totalorder %s20, 1
      %p64 = por %p62, %p63
      %p66 = scmp.ne.s32.totalorder %s51, %s65
      %p67 = scmp.eq.s32.totalorder %s20, 0
      %p68 = por %p66, %p67
      %s70 = sadd.s32 %s69, 1
      %p73 = scmp.eq.s32.totalorder %s14, 1
      %p74 = scmp.ne.s32.totalorder %s69, %s71
      %p75 = scmp.eq.s32.totalorder %s14, 0
      %p76 = por %p74, %p75
      %p77 = scmp.ne.s32.totalorder %s69, %s71
      %p78 = scmp.eq.s32.totalorder %s19, 1
      %p79 = por %p77, %p78
      %p80 = scmp.ne.s32.totalorder %s71, %s72
      %p81 = scmp.eq.s32.totalorder %s19, 0
      %p82 = por %p80, %p81
      %p83 = scmp.ne.s32.totalorder %s71, %s72
      %p84 = scmp.eq.s32.totalorder %s20, 1
      %p85 = por %p83, %p84
      %p87 = scmp.ne.s32.totalorder %s72, %s86
      %p88 = scmp.eq.s32.totalorder %s20, 0
      %p89 = por %p87, %p88
      %s91 = sadd.s32 %s90, 1
      %p94 = scmp.eq.s32.totalorder %s14, 1
      %p95 = scmp.ne.s32.totalorder %s90, %s92
      %p96 = scmp.eq.s32.totalorder %s14, 0
      %p97 = por %p95, %p96
      %p98 = scmp.ne.s32.totalorder %s90, %s92
      %p99 = scmp.eq.s32.totalorder %s19, 1
      %p100 = por %p98, %p99
      %p101 = scmp.ne.s32.totalorder %s92, %s93
      %p102 = scmp.eq.s32.totalorder %s19, 0
      %p103 = por %p101, %p102
      %p104 = scmp.ne.s32.totalorder %s92, %s93
      %p105 = scmp.eq.s32.totalorder %s20, 1
      %p106 = por %p104, %p105
      %p108 = scmp.ne.s32.totalorder %s93, %s107
      %p109 = scmp.eq.s32.totalorder %s20, 0
      %p110 = por %p108, %p109
      %s111 = ssub.s32 %s14, %s21
      %p112 = scmp.eq.s32.totalorder %s111, 0
      %s114 = sadd.s32 %s113, 1
      %s115 = scalar_select %p112, %s113, %s114
      %p118 = pneg %p112
      %p119 = scmp.eq.s32.totalorder %s14, 1
      %p120 = por %p118, %p119
      %p121 = scmp.ne.s32.totalorder %s113, %s116
      %p122 = scmp.eq.s32.totalorder %s14, 0
      %p123 = por %p121, %p122
      %p124 = scmp.ne.s32.totalorder %s113, %s116
      %p125 = scmp.eq.s32.totalorder %s19, 1
      %p126 = por %p124, %p125
      %p127 = scmp.ne.s32.totalorder %s116, %s117
      %p128 = scmp.eq.s32.totalorder %s19, 0
      %p129 = por %p127, %p128
      %p130 = scmp.ne.s32.totalorder %s116, %s117
      %p131 = scmp.eq.s32.totalorder %s20, 1
      %p132 = por %p130, %p131
      %p134 = scmp.ne.s32.totalorder %s117, %s133
      %p135 = scmp.eq.s32.totalorder %s20, 0
      %p136 = por %p134, %p135
      %p137 = scmp.le.s32.totalorder 1, %s14
      %p138 = scmp.lt.s32.totalorder %s14, 3
      %p139 = pnand %p137, %p138
      %p140 = pneg %p139
      // Predicated region
      $region9: #{tpu_custom_call.1} parent=5 // pred_check
        _
      $region10: #{tpu_custom_call.1} parent=5 // pred_check_branch
        %142 = sbr.rel (%p139) target = $region12
      $region11: #{tpu_custom_call.1} parent=5 // pred_region
        %s143 = ssub.s32 %s14, 1
        // Predicated region
        $region13: #{tpu_custom_call.1} parent=11 // pred_check
          %p144 = pneg %p61
        $region14: #{tpu_custom_call.1} parent=11 // pred_check_branch
          %146 = sbr.rel (%p144) target = $region16
        $region15: #{tpu_custom_call.1} parent=11 // pred_region
          %s148 = ssub.s32 1024, 1024
          %149 = vsyncadd [#allocation5], %s148
          %s150 = sshll.u32 [#allocation4], 4
          %s151 = int_to_ptr.vmem [resolvable:$true] %s150
          %156 = dma.hbm_to_vmem [thread:$0]  %s1, 1024, %s151, [#allocation5], 128, 128, 8
        $region16: #{tpu_custom_call.1} parent=11 // pred_fallthru
          _
        // Predicated region
        $region17: #{tpu_custom_call.1} parent=11 // pred_check
          %p157 = pneg %p82
        $region18: #{tpu_custom_call.1} parent=11 // pred_check_branch
          %159 = sbr.rel (%p157) target = $region20
        $region19: #{tpu_custom_call.1} parent=11 // pred_region
          %s161 = ssub.s32 1024, 1024
          %162 = vsyncadd [#allocation5], %s161
          %s163 = sshll.u32 [#allocation6], 4
          %s164 = int_to_ptr.vmem [resolvable:$true] %s163
          %169 = dma.hbm_to_vmem [thread:$0]  %s2, 1024, %s164, [#allocation5], 128, 128, 8
        $region20: #{tpu_custom_call.1} parent=11 // pred_fallthru
          _
        // Predicated region
        $region21: #{tpu_custom_call.1} parent=11 // pred_check
          %p170 = pneg %p103
        $region22: #{tpu_custom_call.1} parent=11 // pred_check_branch
          %172 = sbr.rel (%p170) target = $region24
        $region23: #{tpu_custom_call.1} parent=11 // pred_region
          _
        $region24: #{tpu_custom_call.1} parent=11 // pred_fallthru
          _
      $region12: #{tpu_custom_call.1} parent=5 // pred_fallthru
        _
      %p173 = scmp.lt.s32.totalorder %s14, 2
      // Predicated region
      $region25: #{tpu_custom_call.1} parent=5 // pred_check
        %p174 = pneg %p173
      $region26: #{tpu_custom_call.1} parent=5 // pred_check_branch
        %176 = sbr.rel (%p174) target = $region28
      $region27: #{tpu_custom_call.1} parent=5 // pred_region
        // Predicated region
        $region29: #{tpu_custom_call.1} parent=27 // pred_check
          %p177 = pneg %p34
        $region30: #{tpu_custom_call.1} parent=27 // pred_check_branch
          %179 = sbr.rel (%p177) target = $region32
        $region31: #{tpu_custom_call.1} parent=27 // pred_region
          %s180 = sand.u32 %s24, 1
          %s181 = scalar_lea.sflag [#allocation3], %s180
          %s182 = sand.u32 %s24, 1
          %s183 = smul.addr %s182, 128
          %s184 = scalar_lea.vmem [#allocation2], %s183
          %s185 = smul.u32 8, %s14
          %s187 = ssub.s32 2048, 2048
          %188 = vsyncadd %s181, %s187
          %s189 = smul.addr %s185, 2
          %s190 = smul.addr %s189, 128
          %s191 = scalar_lea.hbm %s0, %s190
          %s192 = sshll.u32 %s184, 4
          %s193 = int_to_ptr.vmem [resolvable:$true] %s192
          %198 = dma.hbm_to_vmem [thread:$0]  %s191, 2048, %s193, %s181, 128, 128, 8
        $region32: #{tpu_custom_call.1} parent=27 // pred_fallthru
          _
      $region28: #{tpu_custom_call.1} parent=5 // pred_fallthru
        _
      %p199 = scmp.le.s32.totalorder 1, %s14
      %p200 = scmp.lt.s32.totalorder %s14, 3
      %p201 = pnand %p199, %p200
      %p202 = pneg %p201
      // Predicated region
      $region33: #{tpu_custom_call.1} parent=5 // pred_check
        _
      $region34: #{tpu_custom_call.1} parent=5 // pred_check_branch
        %204 = sbr.rel (%p201) target = $region36
      $region35: #{tpu_custom_call.1} parent=5 // pred_region
        %s205 = ssub.s32 %s14, 1
        %s206 = sand.u32 %s27, 1
        %s207 = scalar_lea.sflag [#allocation3], %s206
        %s208 = sand.u32 %s27, 1
        %s209 = smul.addr %s208, 128
        %s210 = scalar_lea.vmem [#allocation2], %s209
        // Predicated region
        $region37: #{tpu_custom_call.1} parent=35 // pred_check
          %p211 = pneg %p40
        $region38: #{tpu_custom_call.1} parent=35 // pred_check_branch
          %213 = sbr.rel (%p211) target = $region40
        $region39: #{tpu_custom_call.1} parent=35 // pred_region
          %214 = dma.done %s207, 2048
        $region40: #{tpu_custom_call.1} parent=35 // pred_fallthru
          _
        // Predicated region
        $region41: #{tpu_custom_call.1} parent=35 // pred_check
          %p215 = pneg %p61
        $region42: #{tpu_custom_call.1} parent=35 // pred_check_branch
          %217 = sbr.rel (%p215) target = $region44
        $region43: #{tpu_custom_call.1} parent=35 // pred_region
          %218 = dma.done [#allocation5], 1024
        $region44: #{tpu_custom_call.1} parent=35 // pred_fallthru
          _
        // Predicated region
        $region45: #{tpu_custom_call.1} parent=35 // pred_check
          %p219 = pneg %p82
        $region46: #{tpu_custom_call.1} parent=35 // pred_check_branch
          %221 = sbr.rel (%p219) target = $region48
        $region47: #{tpu_custom_call.1} parent=35 // pred_region
          %222 = dma.done [#allocation5], 1024
        $region48: #{tpu_custom_call.1} parent=35 // pred_fallthru
          _
        %s223 = sand.u32 %s27, 1
        %s224 = scalar_lea.sflag [#allocation3], %s223
        %s225 = sand.u32 %s27, 1
        %s226 = smul.addr %s225, 128
        %s227 = scalar_lea.vmem [#allocation2], %s226
        %p228 = pneg %p40
        %p229 = pneg %p37
        %p230 = pneg %p61
        %p231 = pneg %p58
        %p232 = pneg %p82
        %p233 = pneg %p79
        %p234 = pneg %p103
        %p235 = pneg %p100
        %p236 = pneg %p129
        %p237 = pneg %p126
        %s238 = smul.u32 8, %s19
        %p239 = scmp.lt.s32.totalorder %s238, 15
        %s240 = scalar_select %p239, %s238, 15
        %s241 = smul.addr %s240, 8
        %s242 = scalar_lea.vmem %s4, %s241
        %s243 = smul.u32 8, %s19
        %s244 = smul.u32 8, %s19
        %p245 = scmp.lt.s32.totalorder %s244, 15
        %s246 = scalar_select %p245, %s244, 15
        %s247 = smul.addr %s246, 8
        %s248 = scalar_lea.vmem %s4, %s247
        %s249 = smul.u32 8, %s19
        %v250 = vld [vmem:[%s210] sm:$0xff]
        %v251 = vld [vmem:[%s210 + $0x8] sm:$0xff]
        %v252 = vld [vmem:[%s210 + $0x10] sm:$0xff]
        %v253 = vld [vmem:[%s210 + $0x18] sm:$0xff]
        %v254 = vld [vmem:[%s210 + $0x20] sm:$0xff]
        %v255 = vld [vmem:[%s210 + $0x28] sm:$0xff]
        %v256 = vld [vmem:[%s210 + $0x30] sm:$0xff]
        %v257 = vld [vmem:[%s210 + $0x38] sm:$0xff]
        %v258 = vld [vmem:[%s210 + $0x40] sm:$0xff]
        %v259 = vld [vmem:[%s210 + $0x48] sm:$0xff]
        %v260 = vld [vmem:[%s210 + $0x50] sm:$0xff]
        %v261 = vld [vmem:[%s210 + $0x58] sm:$0xff]
        %v262 = vld [vmem:[%s210 + $0x60] sm:$0xff]
        %v263 = vld [vmem:[%s210 + $0x68] sm:$0xff]
        %v264 = vld [vmem:[%s210 + $0x70] sm:$0xff]
        %v265 = vld [vmem:[%s210 + $0x78] sm:$0xff]
        %vm266 = vcmask 523264
        %v267 = vsel %vm266, %v250, 0.0
        %268 = vadd.xlane.f32.xlu0 %v267
        %v269 = vpop.xlane.xlu0 %268
        %v270 = vsel %vm266, %v252, 0.0
        %271 = vadd.xlane.f32.xlu0 %v270
        %v272 = vpop.xlane.xlu0 %271
        %v273 = vsel %vm266, %v254, 0.0
        %274 = vadd.xlane.f32.xlu0 %v273
        %v275 = vpop.xlane.xlu0 %274
        %v276 = vsel %vm266, %v256, 0.0
        %277 = vadd.xlane.f32.xlu0 %v276
        %v278 = vpop.xlane.xlu0 %277
        %v279 = vsel %vm266, %v258, 0.0
        %280 = vadd.xlane.f32.xlu0 %v279
        %v281 = vpop.xlane.xlu0 %280
        %v282 = vsel %vm266, %v260, 0.0
        %283 = vadd.xlane.f32.xlu0 %v282
        %v284 = vpop.xlane.xlu0 %283
        %v285 = vsel %vm266, %v262, 0.0
        %286 = vadd.xlane.f32.xlu0 %v285
        %v287 = vpop.xlane.xlu0 %286
        %v288 = vsel %vm266, %v264, 0.0
        %289 = vadd.xlane.f32.xlu0 %v288
        %v290 = vpop.xlane.xlu0 %289
        %v291 = vsel %vm266, %v251, 0.0
        %292 = vadd.xlane.f32.xlu0 %v291
        %v293 = vpop.xlane.xlu0 %292
        %v294 = vsel %vm266, %v253, 0.0
        %295 = vadd.xlane.f32.xlu0 %v294
        %v296 = vpop.xlane.xlu0 %295
        %v297 = vsel %vm266, %v255, 0.0
        %298 = vadd.xlane.f32.xlu0 %v297
        %v299 = vpop.xlane.xlu0 %298
        %v300 = vsel %vm266, %v257, 0.0
        %301 = vadd.xlane.f32.xlu0 %v300
        %v302 = vpop.xlane.xlu0 %301
        %v303 = vsel %vm266, %v259, 0.0
        %304 = vadd.xlane.f32.xlu0 %v303
        %v305 = vpop.xlane.xlu0 %304
        %v306 = vsel %vm266, %v261, 0.0
        %307 = vadd.xlane.f32.xlu0 %v306
        %v308 = vpop.xlane.xlu0 %307
        %v309 = vsel %vm266, %v263, 0.0
        %310 = vadd.xlane.f32.xlu0 %v309
        %v311 = vpop.xlane.xlu0 %310
        %v312 = vsel %vm266, %v265, 0.0
        %313 = vadd.xlane.f32.xlu0 %v312
        %v314 = vpop.xlane.xlu0 %313
        %v315 = vadd.f32 %v269, %v293
        %v316 = vadd.f32 %v272, %v296
        %v317 = vadd.f32 %v275, %v299
        %v318 = vadd.f32 %v278, %v302
        %v319 = vadd.f32 %v281, %v305
        %v320 = vadd.f32 %v284, %v308
        %v321 = vadd.f32 %v287, %v311
        %v322 = vadd.f32 %v290, %v314
        %v323 = vmul.f32 %v250, %v250
        %v324 = vmul.f32 %v252, %v252
        %v325 = vmul.f32 %v254, %v254
        %v326 = vmul.f32 %v256, %v256
        %v327 = vmul.f32 %v258, %v258
        %v328 = vmul.f32 %v260, %v260
        %v329 = vmul.f32 %v262, %v262
        %v330 = vmul.f32 %v264, %v264
        %v331 = vsel %vm266, %v323, 0.0
        %332 = vadd.xlane.f32.xlu0 %v331
        %v333 = vpop.xlane.xlu0 %332
        %v334 = vsel %vm266, %v324, 0.0
        %335 = vadd.xlane.f32.xlu0 %v334
        %v336 = vpop.xlane.xlu0 %335
        %v337 = vsel %vm266, %v325, 0.0
        %338 = vadd.xlane.f32.xlu0 %v337
        %v339 = vpop.xlane.xlu0 %338
        %v340 = vsel %vm266, %v326, 0.0
        %341 = vadd.xlane.f32.xlu0 %v340
        %v342 = vpop.xlane.xlu0 %341
        %v343 = vsel %vm266, %v327, 0.0
        %344 = vadd.xlane.f32.xlu0 %v343
        %v345 = vpop.xlane.xlu0 %344
        %v346 = vsel %vm266, %v328, 0.0
        %347 = vadd.xlane.f32.xlu0 %v346
        %v348 = vpop.xlane.xlu0 %347
        %v349 = vsel %vm266, %v329, 0.0
        %350 = vadd.xlane.f32.xlu0 %v349
        %v351 = vpop.xlane.xlu0 %350
        %v352 = vsel %vm266, %v330, 0.0
        %353 = vadd.xlane.f32.xlu0 %v352
        %v354 = vpop.xlane.xlu0 %353
        %v355 = vmul.f32 %v251, %v251
        %v356 = vmul.f32 %v253, %v253
        %v357 = vmul.f32 %v255, %v255
        %v358 = vmul.f32 %v257, %v257
        %v359 = vmul.f32 %v259, %v259
        %v360 = vmul.f32 %v261, %v261
        %v361 = vmul.f32 %v263, %v263
        %v362 = vmul.f32 %v265, %v265
        %v363 = vsel %vm266, %v355, 0.0
        %364 = vadd.xlane.f32.xlu0 %v363
        %v365 = vpop.xlane.xlu0 %364
        %v366 = vsel %vm266, %v356, 0.0
        %367 = vadd.xlane.f32.xlu0 %v366
        %v368 = vpop.xlane.xlu0 %367
        %v369 = vsel %vm266, %v357, 0.0
        %370 = vadd.xlane.f32.xlu0 %v369
        %v371 = vpop.xlane.xlu0 %370
        %v372 = vsel %vm266, %v358, 0.0
        %373 = vadd.xlane.f32.xlu0 %v372
        %v374 = vpop.xlane.xlu0 %373
        %v375 = vsel %vm266, %v359, 0.0
        %376 = vadd.xlane.f32.xlu0 %v375
        %v377 = vpop.xlane.xlu0 %376
        %v378 = vsel %vm266, %v360, 0.0
        %379 = vadd.xlane.f32.xlu0 %v378
        %v380 = vpop.xlane.xlu0 %379
        %v381 = vsel %vm266, %v361, 0.0
        %382 = vadd.xlane.f32.xlu0 %v381
        %v383 = vpop.xlane.xlu0 %382
        %v384 = vsel %vm266, %v362, 0.0
        %385 = vadd.xlane.f32.xlu0 %v384
        %v386 = vpop.xlane.xlu0 %385
        %v387 = vadd.f32 %v333, %v365
        %v388 = vadd.f32 %v336, %v368
        %v389 = vadd.f32 %v339, %v371
        %v390 = vadd.f32 %v342, %v374
        %v391 = vadd.f32 %v345, %v377
        %v392 = vadd.f32 %v348, %v380
        %v393 = vadd.f32 %v351, %v383
        %v394 = vadd.f32 %v354, %v386
        %v395 = vmul.f32 %v315, 0.0078125
        %v396 = vmul.f32 %v316, 0.0078125
        %v397 = vmul.f32 %v317, 0.0078125
        %v398 = vmul.f32 %v318, 0.0078125
        %v399 = vmul.f32 %v319, 0.0078125
        %v400 = vmul.f32 %v320, 0.0078125
        %v401 = vmul.f32 %v321, 0.0078125
        %v402 = vmul.f32 %v322, 0.0078125
        %v403 = vmul.f32 %v387, 0.0078125
        %v404 = vmul.f32 %v388, 0.0078125
        %v405 = vmul.f32 %v389, 0.0078125
        %v406 = vmul.f32 %v390, 0.0078125
        %v407 = vmul.f32 %v391, 0.0078125
        %v408 = vmul.f32 %v392, 0.0078125
        %v409 = vmul.f32 %v393, 0.0078125
        %v410 = vmul.f32 %v394, 0.0078125
        %v411 = vmul.f32 %v395, %v395
        %v412 = vmul.f32 %v396, %v396
        %v413 = vmul.f32 %v397, %v397
        %v414 = vmul.f32 %v398, %v398
        %v415 = vmul.f32 %v399, %v399
        %v416 = vmul.f32 %v400, %v400
        %v417 = vmul.f32 %v401, %v401
        %v418 = vmul.f32 %v402, %v402
        %v419 = vsub.f32 %v403, %v411
        %v420 = vsub.f32 %v404, %v412
        %v421 = vsub.f32 %v405, %v413
        %v422 = vsub.f32 %v406, %v414
        %v423 = vsub.f32 %v407, %v415
        %v424 = vsub.f32 %v408, %v416
        %v425 = vsub.f32 %v409, %v417
        %v426 = vsub.f32 %v410, %v418
        %v427 = vmax.f32 %v419, 0.0
        %v428 = vmax.f32 %v420, 0.0
        %v429 = vmax.f32 %v421, 0.0
        %v430 = vmax.f32 %v422, 0.0
        %v431 = vmax.f32 %v423, 0.0
        %v432 = vmax.f32 %v424, 0.0
        %v433 = vmax.f32 %v425, 0.0
        %v434 = vmax.f32 %v426, 0.0
        %v435 = vadd.f32 %v427, 1e-05
        %v436 = vadd.f32 %v428, 1e-05
        %v437 = vadd.f32 %v429, 1e-05
        %v438 = vadd.f32 %v430, 1e-05
        %v439 = vadd.f32 %v431, 1e-05
        %v440 = vadd.f32 %v432, 1e-05
        %v441 = vadd.f32 %v433, 1e-05
        %v442 = vadd.f32 %v434, 1e-05
        %v443 = vrsqrt.pop %v435
        %v444 = vrsqrt.pop %v436
        %v445 = vrsqrt.pop %v437
        %v446 = vrsqrt.pop %v438
        %v447 = vrsqrt.pop %v439
        %v448 = vrsqrt.pop %v440
        %v449 = vrsqrt.pop %v441
        %v450 = vrsqrt.pop %v442
        %v451 = vsub.f32 0.0, %v395
        %v452 = vsub.f32 0.0, %v396
        %v453 = vsub.f32 0.0, %v397
        %v454 = vsub.f32 0.0, %v398
        %v455 = vsub.f32 0.0, %v399
        %v456 = vsub.f32 0.0, %v400
        %v457 = vsub.f32 0.0, %v401
        %v458 = vsub.f32 0.0, %v402
        %v459 = vmul.f32 %v451, %v443
        %v460 = vmul.f32 %v452, %v444
        %v461 = vmul.f32 %v453, %v445
        %v462 = vmul.f32 %v454, %v446
        %v463 = vmul.f32 %v455, %v447
        %v464 = vmul.f32 %v456, %v448
        %v465 = vmul.f32 %v457, %v449
        %v466 = vmul.f32 %v458, %v450
        %v467 = vmul.f32 %v250, %v443
        %v468 = vmul.f32 %v252, %v444
        %v469 = vmul.f32 %v254, %v445
        %v470 = vmul.f32 %v256, %v446
        %v471 = vmul.f32 %v258, %v447
        %v472 = vmul.f32 %v260, %v448
        %v473 = vmul.f32 %v262, %v449
        %v474 = vmul.f32 %v264, %v450
        %v475 = vadd.f32 %v467, %v459
        %v476 = vadd.f32 %v468, %v460
        %v477 = vadd.f32 %v469, %v461
        %v478 = vadd.f32 %v470, %v462
        %v479 = vadd.f32 %v471, %v463
        %v480 = vadd.f32 %v472, %v464
        %v481 = vadd.f32 %v473, %v465
        %v482 = vadd.f32 %v474, %v466
        %v483 = vmul.f32 %v251, %v443
        %v484 = vmul.f32 %v253, %v444
        %v485 = vmul.f32 %v255, %v445
        %v486 = vmul.f32 %v257, %v446
        %v487 = vmul.f32 %v259, %v447
        %v488 = vmul.f32 %v261, %v448
        %v489 = vmul.f32 %v263, %v449
        %v490 = vmul.f32 %v265, %v450
        %v491 = vadd.f32 %v483, %v459
        %v492 = vadd.f32 %v484, %v460
        %v493 = vadd.f32 %v485, %v461
        %v494 = vadd.f32 %v486, %v462
        %v495 = vadd.f32 %v487, %v463
        %v496 = vadd.f32 %v488, %v464
        %v497 = vadd.f32 %v489, %v465
        %v498 = vadd.f32 %v490, %v466
        %v499 = vld [vmem:[#allocation4] sm:$0xff]
        %v500 = vld [vmem:[#allocation4 + $0x8] sm:$0xff]
        %v501 = vld [vmem:[#allocation4 + $0x10] sm:$0xff]
        %v502 = vld [vmem:[#allocation4 + $0x18] sm:$0xff]
        %v503 = vld [vmem:[#allocation4 + $0x20] sm:$0xff]
        %v504 = vld [vmem:[#allocation4 + $0x28] sm:$0xff]
        %v505 = vld [vmem:[#allocation4 + $0x30] sm:$0xff]
        %v506 = vld [vmem:[#allocation4 + $0x38] sm:$0xff]
        %v507 = vld [vmem:[#allocation6] sm:$0xff]
        %v508 = vld [vmem:[#allocation6 + $0x8] sm:$0xff]
        %v509 = vld [vmem:[#allocation6 + $0x10] sm:$0xff]
        %v510 = vld [vmem:[#allocation6 + $0x18] sm:$0xff]
        %v511 = vld [vmem:[#allocation6 + $0x20] sm:$0xff]
        %v512 = vld [vmem:[#allocation6 + $0x28] sm:$0xff]
        %v513 = vld [vmem:[#allocation6 + $0x30] sm:$0xff]
        %v514 = vld [vmem:[#allocation6 + $0x38] sm:$0xff]
        %v516 = vsel %vm266, %v491, 0
        %v519 = vsel %vm266, %v492, 0
        %v522 = vsel %vm266, %v493, 0
        %v525 = vsel %vm266, %v494, 0
        %v528 = vsel %vm266, %v495, 0
        %v531 = vsel %vm266, %v496, 0
        %v534 = vsel %vm266, %v497, 0
        %v537 = vsel %vm266, %v498, 0
        %539 = vmatprep.subr.mxu0 0.0
        %540 = vmatpush1.msra.mxu0 0.0
        %541 = vmatprep.subr.mxu0 0.0
        %542 = vmatpush1.msra.mxu0 0.0
        %543 = vmatprep.subr.mxu0 0.0
        %544 = vmatpush1.msra.mxu0 0.0
        %545 = vmatprep.subr.mxu0 0.0
        %546 = vmatpush1.msra.mxu0 0.0
        %547 = vmatprep.subr.mxu0 0.0
        %548 = vmatpush1.msra.mxu0 0.0
        %549 = vmatprep.subr.mxu0 0.0
        %550 = vmatpush1.msra.mxu0 0.0
        %551 = vmatprep.subr.mxu0 0.0
        %552 = vmatpush1.msra.mxu0 0.0
        %553 = vmatprep.subr.mxu0 0.0
        %554 = vmatpush1.msra.mxu0 0.0
        %555 = vmatprep.subr.mxu0 0.0
        %556 = vmatpush1.msra.mxu0 %v514
        %557 = vmatprep.subr.mxu0 0.0
        %558 = vmatpush1.msra.mxu0 %v513
        %559 = vmatprep.subr.mxu0 0.0
        %560 = vmatpush1.msra.mxu0 %v512
        %561 = vmatprep.subr.mxu0 0.0
        %562 = vmatpush1.msra.mxu0 %v511
        %563 = vmatprep.subr.mxu0 0.0
        %564 = vmatpush1.msra.mxu0 %v510
        %565 = vmatprep.subr.mxu0 0.0
        %566 = vmatpush1.msra.mxu0 %v509
        %567 = vmatprep.subr.mxu0 0.0
        %568 = vmatpush1.msra.mxu0 %v508
        %569 = vmatprep.subr.mxu0 0.0
        %570 = vmatpush1.msra.mxu0 %v507
        %571 = vmatprep.subr.mxu0 0.0
        %572 = vmatpush2.msra.mxu0 0.0
        %573 = vmatprep.subr.mxu0 0.0
        %574 = vmatpush2.msra.mxu0 0.0
        %575 = vmatprep.subr.mxu0 0.0
        %576 = vmatpush2.msra.mxu0 0.0
        %577 = vmatprep.subr.mxu0 0.0
        %578 = vmatpush2.msra.mxu0 0.0
        %579 = vmatprep.subr.mxu0 0.0
        %580 = vmatpush2.msra.mxu0 0.0
        %581 = vmatprep.subr.mxu0 0.0
        %582 = vmatpush2.msra.mxu0 0.0
        %583 = vmatprep.subr.mxu0 0.0
        %584 = vmatpush2.msra.mxu0 0.0
        %585 = vmatprep.subr.mxu0 0.0
        %586 = vmatpush2.msra.mxu0 0.0
        %587 = vmatprep.subr.mxu0 0.0
        %588 = vmatpush2.msra.mxu0 0.0
        %589 = vmatprep.subr.mxu0 0.0
        %590 = vmatpush2.msra.mxu0 0.0
        %591 = vmatprep.subr.mxu0 0.0
        %592 = vmatpush2.msra.mxu0 0.0
        %593 = vmatprep.subr.mxu0 0.0
        %594 = vmatpush2.msra.mxu0 0.0
        %595 = vmatprep.subr.mxu0 0.0
        %596 = vmatpush2.msra.mxu0 0.0
        %597 = vmatprep.subr.mxu0 0.0
        %598 = vmatpush2.msra.mxu0 0.0
        %599 = vmatprep.subr.mxu0 0.0
        %600 = vmatpush2.msra.mxu0 0.0
        %601 = vmatprep.subr.mxu0 0.0
        %602 = vmatpush2.msra.mxu0 0.0
        %603 = vmatprep.mubr.f32.mxu0 0.0
        %604 = vmatmul.mubr.f32.gmra.mxu0 %v516
        %v605 = vpop.f32.mrf.mxu0
        %v606 = vadd.f32 0.0, %v605
        %v607 = vpop.f32.mrf.mxu0
        %608 = vmatprep.mubr.f32.mxu0 0.0
        %609 = vmatmul.mubr.f32.gmra.mxu0 %v519
        %v610 = vpop.f32.mrf.mxu0
        %v611 = vadd.f32 0.0, %v610
        %v612 = vpop.f32.mrf.mxu0
        %613 = vmatprep.mubr.f32.mxu0 0.0
        %614 = vmatmul.mubr.f32.gmra.mxu0 %v522
        %v615 = vpop.f32.mrf.mxu0
        %v616 = vadd.f32 0.0, %v615
        %v617 = vpop.f32.mrf.mxu0
        %618 = vmatprep.mubr.f32.mxu0 0.0
        %619 = vmatmul.mubr.f32.gmra.mxu0 %v525
        %v620 = vpop.f32.mrf.mxu0
        %v621 = vadd.f32 0.0, %v620
        %v622 = vpop.f32.mrf.mxu0
        %623 = vmatprep.mubr.f32.mxu0 0.0
        %624 = vmatmul.mubr.f32.gmra.mxu0 %v528
        %v625 = vpop.f32.mrf.mxu0
        %v626 = vadd.f32 0.0, %v625
        %v627 = vpop.f32.mrf.mxu0
        %628 = vmatprep.mubr.f32.mxu0 0.0
        %629 = vmatmul.mubr.f32.gmra.mxu0 %v531
        %v630 = vpop.f32.mrf.mxu0
        %v631 = vadd.f32 0.0, %v630
        %v632 = vpop.f32.mrf.mxu0
        %633 = vmatprep.mubr.f32.mxu0 0.0
        %634 = vmatmul.mubr.f32.gmra.mxu0 %v534
        %v635 = vpop.f32.mrf.mxu0
        %v636 = vadd.f32 0.0, %v635
        %v637 = vpop.f32.mrf.mxu0
        %638 = vmatprep.mubr.f32.mxu0 0.0
        %639 = vmatmul.mubr.f32.gmra.mxu0 %v537
        %v640 = vpop.f32.mrf.mxu0
        %v641 = vadd.f32 0.0, %v640
        %v642 = vpop.f32.mrf.mxu0
        %643 = vdwg.mxu0
        %v645 = vsel %vm266, %v475, 0
        %v648 = vsel %vm266, %v476, 0
        %v651 = vsel %vm266, %v477, 0
        %v654 = vsel %vm266, %v478, 0
        %v657 = vsel %vm266, %v479, 0
        %v660 = vsel %vm266, %v480, 0
        %v663 = vsel %vm266, %v481, 0
        %v666 = vsel %vm266, %v482, 0
        %668 = vmatprep.subr.mxu0 0.0
        %669 = vmatpush1.msra.mxu0 0.0
        %670 = vmatprep.subr.mxu0 0.0
        %671 = vmatpush1.msra.mxu0 0.0
        %672 = vmatprep.subr.mxu0 0.0
        %673 = vmatpush1.msra.mxu0 0.0
        %674 = vmatprep.subr.mxu0 0.0
        %675 = vmatpush1.msra.mxu0 0.0
        %676 = vmatprep.subr.mxu0 0.0
        %677 = vmatpush1.msra.mxu0 0.0
        %678 = vmatprep.subr.mxu0 0.0
        %679 = vmatpush1.msra.mxu0 0.0
        %680 = vmatprep.subr.mxu0 0.0
        %681 = vmatpush1.msra.mxu0 0.0
        %682 = vmatprep.subr.mxu0 0.0
        %683 = vmatpush1.msra.mxu0 0.0
        %684 = vmatprep.subr.mxu0 0.0
        %685 = vmatpush1.msra.mxu0 %v506
        %686 = vmatprep.subr.mxu0 0.0
        %687 = vmatpush1.msra.mxu0 %v505
        %688 = vmatprep.subr.mxu0 0.0
        %689 = vmatpush1.msra.mxu0 %v504
        %690 = vmatprep.subr.mxu0 0.0
        %691 = vmatpush1.msra.mxu0 %v503
        %692 = vmatprep.subr.mxu0 0.0
        %693 = vmatpush1.msra.mxu0 %v502
        %694 = vmatprep.subr.mxu0 0.0
        %695 = vmatpush1.msra.mxu0 %v501
        %696 = vmatprep.subr.mxu0 0.0
        %697 = vmatpush1.msra.mxu0 %v500
        %698 = vmatprep.subr.mxu0 0.0
        %699 = vmatpush1.msra.mxu0 %v499
        %700 = vmatprep.subr.mxu0 0.0
        %701 = vmatpush2.msra.mxu0 0.0
        %702 = vmatprep.subr.mxu0 0.0
        %703 = vmatpush2.msra.mxu0 0.0
        %704 = vmatprep.subr.mxu0 0.0
        %705 = vmatpush2.msra.mxu0 0.0
        %706 = vmatprep.subr.mxu0 0.0
        %707 = vmatpush2.msra.mxu0 0.0
        %708 = vmatprep.subr.mxu0 0.0
        %709 = vmatpush2.msra.mxu0 0.0
        %710 = vmatprep.subr.mxu0 0.0
        %711 = vmatpush2.msra.mxu0 0.0
        %712 = vmatprep.subr.mxu0 0.0
        %713 = vmatpush2.msra.mxu0 0.0
        %714 = vmatprep.subr.mxu0 0.0
        %715 = vmatpush2.msra.mxu0 0.0
        %716 = vmatprep.subr.mxu0 0.0
        %717 = vmatpush2.msra.mxu0 0.0
        %718 = vmatprep.subr.mxu0 0.0
        %719 = vmatpush2.msra.mxu0 0.0
        %720 = vmatprep.subr.mxu0 0.0
        %721 = vmatpush2.msra.mxu0 0.0
        %722 = vmatprep.subr.mxu0 0.0
        %723 = vmatpush2.msra.mxu0 0.0
        %724 = vmatprep.subr.mxu0 0.0
        %725 = vmatpush2.msra.mxu0 0.0
        %726 = vmatprep.subr.mxu0 0.0
        %727 = vmatpush2.msra.mxu0 0.0
        %728 = vmatprep.subr.mxu0 0.0
        %729 = vmatpush2.msra.mxu0 0.0
        %730 = vmatprep.subr.mxu0 0.0
        %731 = vmatpush2.msra.mxu0 0.0
        %732 = vmatprep.mubr.f32.mxu0 0.0
        %733 = vmatmul.mubr.f32.gmra.mxu0 %v645
        %v734 = vpop.f32.mrf.mxu0
        %v735 = vadd.f32 %v606, %v734
        %v736 = vpop.f32.mrf.mxu0
        %737 = vmatprep.mubr.f32.mxu0 0.0
        %738 = vmatmul.mubr.f32.gmra.mxu0 %v648
        %v739 = vpop.f32.mrf.mxu0
        %v740 = vadd.f32 %v611, %v739
        %v741 = vpop.f32.mrf.mxu0
        %742 = vmatprep.mubr.f32.mxu0 0.0
        %743 = vmatmul.mubr.f32.gmra.mxu0 %v651
        %v744 = vpop.f32.mrf.mxu0
        %v745 = vadd.f32 %v616, %v744
        %v746 = vpop.f32.mrf.mxu0
        %747 = vmatprep.mubr.f32.mxu0 0.0
        %748 = vmatmul.mubr.f32.gmra.mxu0 %v654
        %v749 = vpop.f32.mrf.mxu0
        %v750 = vadd.f32 %v621, %v749
        %v751 = vpop.f32.mrf.mxu0
        %752 = vmatprep.mubr.f32.mxu0 0.0
        %753 = vmatmul.mubr.f32.gmra.mxu0 %v657
        %v754 = vpop.f32.mrf.mxu0
        %v755 = vadd.f32 %v626, %v754
        %v756 = vpop.f32.mrf.mxu0
        %757 = vmatprep.mubr.f32.mxu0 0.0
        %758 = vmatmul.mubr.f32.gmra.mxu0 %v660
        %v759 = vpop.f32.mrf.mxu0
        %v760 = vadd.f32 %v631, %v759
        %v761 = vpop.f32.mrf.mxu0
        %762 = vmatprep.mubr.f32.mxu0 0.0
        %763 = vmatmul.mubr.f32.gmra.mxu0 %v663
        %v764 = vpop.f32.mrf.mxu0
        %v765 = vadd.f32 %v636, %v764
        %v766 = vpop.f32.mrf.mxu0
        %767 = vmatprep.mubr.f32.mxu0 0.0
        %768 = vmatmul.mubr.f32.gmra.mxu0 %v666
        %v769 = vpop.f32.mrf.mxu0
        %v770 = vadd.f32 %v641, %v769
        %v771 = vpop.f32.mrf.mxu0
        %772 = vdwg.mxu0
        %v773 = vld [vmem:[%s3] sm:$0x1]
        %v775 = vlaneseq
        %v776 = vshrl.u32 %v775, 7
        %v777 = vsub.s32 0, %v776
        %v778 = vrot.slane %v773, %v777
        %v780 = vadd.f32 %v735, %v778
        %v781 = vadd.f32 %v740, %v778
        %v782 = vadd.f32 %v745, %v778
        %v783 = vadd.f32 %v750, %v778
        %v784 = vadd.f32 %v755, %v778
        %v785 = vadd.f32 %v760, %v778
        %v786 = vadd.f32 %v765, %v778
        %v787 = vadd.f32 %v770, %v778
        %788 = vst.msk [vmem:[%s248] sm:$0xff] %vm266, %v780
        %789 = vst.msk [vmem:[%s248 + $0x8] sm:$0xff] %vm266, %v781
        %790 = vst.msk [vmem:[%s248 + $0x10] sm:$0xff] %vm266, %v782
        %791 = vst.msk [vmem:[%s248 + $0x18] sm:$0xff] %vm266, %v783
        %792 = vst.msk [vmem:[%s248 + $0x20] sm:$0xff] %vm266, %v784
        %793 = vst.msk [vmem:[%s248 + $0x28] sm:$0xff] %vm266, %v785
        %794 = vst.msk [vmem:[%s248 + $0x30] sm:$0xff] %vm266, %v786
        %795 = vst.msk [vmem:[%s248 + $0x38] sm:$0xff] %vm266, %v787
        %s796 = smul.u32 8, %s19
        %p797 = scmp.lt.s32.totalorder %s796, 15
        %s798 = scalar_select %p797, %s796, 15
        %s799 = smul.addr %s798, 8
        %s800 = scalar_lea.vmem %s4, %s799
        // Predicated region
        $region49: #{tpu_custom_call.1} parent=35 // pred_check
          %p801 = pneg %p126
        $region50: #{tpu_custom_call.1} parent=35 // pred_check_branch
          %803 = sbr.rel (%p801) target = $region52
        $region51: #{tpu_custom_call.1} parent=35 // pred_region
          %s804 = smul.u32 8, %s19
        $region52: #{tpu_custom_call.1} parent=35 // pred_fallthru
          _
      $region36: #{tpu_custom_call.1} parent=5 // pred_fallthru
        _
      %p805 = scmp.le.s32.totalorder 2, %s14
      // Predicated region
      $region53: #{tpu_custom_call.1} parent=5 // pred_check
        %p806 = pneg %p805
      $region54: #{tpu_custom_call.1} parent=5 // pred_check_branch
        %808 = sbr.rel (%p806) target = $region56
      $region55: #{tpu_custom_call.1} parent=5 // pred_region
        %s809 = ssub.s32 %s14, 2
        // Predicated region
        $region57: #{tpu_custom_call.1} parent=55 // pred_check
          %p810 = pneg %p132
        $region58: #{tpu_custom_call.1} parent=55 // pred_check_branch
          %812 = sbr.rel (%p810) target = $region60
        $region59: #{tpu_custom_call.1} parent=55 // pred_region
          %s813 = smul.u32 8, %s20
          %p814 = scmp.lt.s32.totalorder %s813, 15
          %s815 = scalar_select %p814, %s813, 15
          %s816 = smul.addr %s815, 8
          %s817 = scalar_lea.vmem %s4, %s816
        $region60: #{tpu_custom_call.1} parent=55 // pred_fallthru
          _
      $region56: #{tpu_custom_call.1} parent=5 // pred_fallthru
        _
    $region6: #{tpu_custom_call.1} parent=1 // loop_footer
      %s18 = sadd.s32 1, %s14
    $region7: #{tpu_custom_call.1} parent=1 // loop_footer_branch
      %13 = sbr.rel target = $region3
    $region8: #{tpu_custom_call.1} parent=1 // loop_exit
      _
    %818 = vsyncpa [#allocation3], 1
    %s819 = scalar_lea.sflag [#allocation3], 1
    %820 = vsyncpa %s819, 1
    %821 = vsyncpa [#allocation5], 1

</llo_original>
